<compile_context>
chip_gen: v7x
topology: tpu7x:2x2x1
jax: 0.10.0
libtpu: 0.0.40
codegen_flags: <defaults>
</compile_context>

<pallas_src>
import jax
import jax.numpy as jnp
from jax.experimental import pallas as pl
from jax.experimental.pallas import tpu as pltpu


def _round_up(x, m):
    return ((x + m - 1) // m) * m


def _normalize_matmul_kernel(x_ref, scale_ref, shift_ref, w_ref, b_ref, o_ref):
    """One D-reduction step of  y = ((x - mean) / std) @ W + b.

    The x tile is normalized on the VPU (x * scale + shift); W streams from HBM in its
    storage dtype (the dominant HBM cost). The (N, K) output block is resident across
    the reduction axis and accumulated in f32, seeded with the bias at step 0.
    """
    k = pl.program_id(0)

    # (N, tk) * (1, tk) + (1, tk) — elementwise, negligible next to the W DMA.
    xn = x_ref[...] * scale_ref[...] + shift_ref[...]

    @pl.when(k == 0)
    def _init():
        o_ref[...] = jnp.broadcast_to(b_ref[...], o_ref.shape).astype(o_ref.dtype)

    # MXU matmul in the weight's storage dtype (bf16 weights -> bf16 MXU fast path),
    # always accumulating in f32 directly into the resident output block.
    o_ref[...] += jnp.dot(
        xn.astype(w_ref.dtype), w_ref[...], preferred_element_type=jnp.float32
    )


def normalized_model(x_nchw, mean_c, std_c, w, b):
    """Forward of NormalizedModel: model(Normalize(mean, std)(x)).

    The inner model is a linear head:  y = flatten((x - mean) / std) @ w + b.
      x_nchw: (N, C, H, W) f32;  mean_c/std_c: (C,) f32;
      w: (C*H*W, K) in f32 or bf16 (stream dtype = storage dtype);  b: (K,) f32.
    """
    N, C, H, W = x_nchw.shape
    D = C * H * W
    K = w.shape[1]

    # Per-element normalization constants laid out to match the NCHW row-major flatten:
    #   (x - mean) / std  ==  x * scale + shift
    inv_std = (1.0 / std_c).astype(jnp.float32)
    scale = jnp.broadcast_to(inv_std[:, None, None], (C, H, W)).reshape(1, D)
    shift = jnp.broadcast_to((-mean_c * inv_std)[:, None, None], (C, H, W)).reshape(1, D)

    x2d = x_nchw.reshape(N, D).astype(jnp.float32)
    b2d = b.reshape(1, K).astype(jnp.float32)

    # ---- Generation-aware VMEM budget (64 MiB on v7x, 128 MiB on v5e/v6e).
    try:
        vmem_cap = getattr(pltpu.get_tpu_info(), "vmem_capacity_bytes",
                           64 * 1024 * 1024)
    except Exception:  # pragma: no cover - interpret/CPU fallback
        vmem_cap = 64 * 1024 * 1024
    vmem_limit = min(int(vmem_cap) * 3 // 4, 100 * 1024 * 1024)

    # ---- D-tile size: largest lane-aligned tk whose double-buffered tiles
    #      (W tile + x/scale/shift tiles) fit in ~half the VMEM budget.
    w_itemsize = jnp.dtype(w.dtype).itemsize
    tile_budget = vmem_limit // 2
    per_col_bytes = 2 * (K * w_itemsize + (N + 2) * 4)  # double-buffered, per D column
    tk = max(128, min(_round_up(D, 128), (tile_budget // per_col_bytes) // 128 * 128))
    Dp = _round_up(D, tk)

    if Dp != D:
        # Zero-padded tail (scale/shift pads are 0 -> padded columns contribute 0).
        # TODO(synk): cache this one-time zero pad of W outside the forward when D is
        #             not tile-aligned; it rewrites W in HBM every call otherwise.
        pad = Dp - D
        x2d = jnp.pad(x2d, ((0, 0), (0, pad)))
        scale = jnp.pad(scale, ((0, 0), (0, pad)))
        shift = jnp.pad(shift, ((0, 0), (0, pad)))
        w = jnp.pad(w, ((0, pad), (0, 0)))

    grid = (Dp // tk,)  # single D-reduction axis; output block resident across it

    out = pl.pallas_call(
        _normalize_matmul_kernel,
        out_shape=jax.ShapeDtypeStruct((N, K), jnp.float32),
        grid_spec=pltpu.PrefetchScalarGridSpec(
            num_scalar_prefetch=0,
            grid=grid,
            in_specs=[
                pl.BlockSpec((N, tk), lambda k: (0, k)),   # x tile (streams over D)
                pl.BlockSpec((1, tk), lambda k: (0, k)),   # scale tile
                pl.BlockSpec((1, tk), lambda k: (0, k)),   # shift tile
                pl.BlockSpec((tk, K), lambda k: (k, 0)),   # W tile (full K, no pad)
                pl.BlockSpec((1, K), lambda k: (0, 0)),    # bias (resident)
            ],
            out_specs=pl.BlockSpec((N, K), lambda k: (0, 0)),  # resident accumulator
        ),
        compiler_params=pltpu.CompilerParams(
            dimension_semantics=("arbitrary",),  # reduction axis
            vmem_limit_bytes=vmem_limit,
        ),
    )(x2d, scale, shift, w, b2d)

    return out


if __name__ == "__main__":
    # Small shapes consistent with an image-classifier forward: NCHW input.
    N, C, H, W = 2, 4, 16, 16
    K = 32  # number of classes for the synthetic linear model head
    D = C * H * W

    key = jax.random.PRNGKey(0)
    kx, kw, kb = jax.random.split(key, 3)

    x = jax.random.normal(kx, (N, C, H, W), dtype=jnp.float32)

    # Per-channel normalization constants (ImageNet-style stats).
    mean = jnp.array([0.485, 0.456, 0.406, 0.5], dtype=jnp.float32)
    std = jnp.array([0.229, 0.224, 0.225, 0.25], dtype=jnp.float32)

    # Deterministic synthetic inner-model parameters (linear head).
    w_f32 = jax.random.normal(kw, (D, K), dtype=jnp.float32) * 0.02
    b = jax.random.normal(kb, (K,), dtype=jnp.float32) * 0.1

    # Pure-JAX reference of the original module semantics: model(normalize(x)).
    xn_ref = (x - mean[None, :, None, None]) / std[None, :, None, None]
    xn2d = xn_ref.reshape(N, D)
    ref_f32 = xn2d @ w_f32 + b[None, :]

    # f32-weight path (near-exact vs the PyTorch-semantics reference).
    out_f32 = jax.block_until_ready(normalized_model(x, mean, std, w_f32, b))
    assert out_f32.shape == (N, K)
    assert jnp.allclose(out_f32, ref_f32, atol=1e-3, rtol=1e-3), "f32 mismatch vs reference"

    # bf16-weight path: the weight is converted ONCE, outside the forward (this is the
    # "cache narrow weights in HBM" deployment mode); the kernel streams bf16 W and runs
    # the bf16 MXU path with f32 accumulation.
    w_bf16 = w_f32.astype(jnp.bfloat16)
    ref_bf16 = (
        jnp.dot(xn2d.astype(jnp.bfloat16), w_bf16, preferred_element_type=jnp.float32)
        + b[None, :]
    )
    out_bf16 = jax.block_until_ready(normalized_model(x, mean, std, w_bf16, b))
    assert out_bf16.shape == (N, K)
    assert jnp.allclose(out_bf16, ref_bf16, atol=5e-2, rtol=2e-2), "bf16 mismatch vs reference"
    assert jnp.allclose(out_bf16, ref_f32, atol=2.5e-1, rtol=5e-2), "bf16 drifted from f32 reference"

    print("KERNEL_OK")
</pallas_src>

<mosaic_0001>
module attributes {stable_mosaic.version = 11 : i64} {
  func.func @_normalize_matmul_kernel(%arg0: i32, %arg1: memref<2x1024xf32, #tpu.memory_space<vmem>>, %arg2: memref<1x1024xf32, #tpu.memory_space<vmem>>, %arg3: memref<1x1024xf32, #tpu.memory_space<vmem>>, %arg4: memref<1024x32xf32, #tpu.memory_space<vmem>>, %arg5: memref<1x32xf32, #tpu.memory_space<vmem>>, %arg6: memref<2x32xf32, #tpu.memory_space<vmem>>) attributes {dimension_semantics = [#tpu.dimension_semantics<arbitrary>], iteration_bounds = array<i64: 1>, scalar_prefetch = 0 : i64, scratch_operands = 0 : i64, tpu.core_type = #tpu.core_type<tc>, window_params = [{transform_indices = @transform_0, window_bounds = array<i64: 2, 1024>}, {transform_indices = @transform_1, window_bounds = array<i64: 1, 1024>}, {transform_indices = @transform_2, window_bounds = array<i64: 1, 1024>}, {transform_indices = @transform_3, window_bounds = array<i64: 1024, 32>}, {pipeline_mode = #tpu.pipeline_mode<synchronous>, transform_indices = @transform_4, window_bounds = array<i64: 1, 32>}, {pipeline_mode = #tpu.pipeline_mode<synchronous>, transform_indices = @transform_5, window_bounds = array<i64: 2, 32>}]} {
    %c0 = arith.constant 0 : index
    %c0_0 = arith.constant 0 : index
    %0 = vector.load %arg1[%c0, %c0_0] : memref<2x1024xf32, #tpu.memory_space<vmem>>, vector<2x1024xf32>
    %c0_1 = arith.constant 0 : index
    %c0_2 = arith.constant 0 : index
    %1 = vector.load %arg2[%c0_1, %c0_2] : memref<1x1024xf32, #tpu.memory_space<vmem>>, vector<1x1024xf32>
    %2 = vector.broadcast %1 : vector<1x1024xf32> to vector<2x1024xf32>
    %3 = arith.mulf %0, %2 : vector<2x1024xf32>
    %c0_3 = arith.constant 0 : index
    %c0_4 = arith.constant 0 : index
    %4 = vector.load %arg3[%c0_3, %c0_4] : memref<1x1024xf32, #tpu.memory_space<vmem>>, vector<1x1024xf32>
    %5 = vector.broadcast %4 : vector<1x1024xf32> to vector<2x1024xf32>
    %6 = arith.addf %3, %5 : vector<2x1024xf32>
    %c0_i32 = arith.constant 0 : i32
    %7 = arith.cmpi eq, %arg0, %c0_i32 : i32
    %8 = arith.extui %7 : i1 to i32
    %c0_i32_5 = arith.constant 0 : i32
    %9 = arith.cmpi ne, %8, %c0_i32_5 : i32
    scf.if %9 {
      %c0_12 = arith.constant 0 : index
      %c0_13 = arith.constant 0 : index
      %15 = vector.load %arg5[%c0_12, %c0_13] : memref<1x32xf32, #tpu.memory_space<vmem>>, vector<1x32xf32>
      %16 = vector.shape_cast %15 : vector<1x32xf32> to vector<1x32xf32>
      %17 = vector.broadcast %16 : vector<1x32xf32> to vector<2x32xf32>
      %c0_14 = arith.constant 0 : index
      %c0_15 = arith.constant 0 : index
      %18 = vector.load %arg6[%c0_14, %c0_15] : memref<2x32xf32, #tpu.memory_space<vmem>>, vector<2x32xf32>
      tpu.vector_store %arg6[%c0_14, %c0_15], %17 {strides = array<i32>} : memref<2x32xf32, #tpu.memory_space<vmem>>, vector<2x32xf32>,
    } else {
    }
    %c0_6 = arith.constant 0 : index
    %c0_7 = arith.constant 0 : index
    %10 = vector.load %arg6[%c0_6, %c0_7] : memref<2x32xf32, #tpu.memory_space<vmem>>, vector<2x32xf32>
    %c0_8 = arith.constant 0 : index
    %c0_9 = arith.constant 0 : index
    %11 = vector.load %arg4[%c0_8, %c0_9] : memref<1024x32xf32, #tpu.memory_space<vmem>>, vector<1024x32xf32>
    %cst = arith.constant dense<0.000000e+00> : vector<2x32xf32>
    %12 = tpu.matmul %6, %11, %cst {dimension_numbers = #tpu.dot_dimension_numbers<[1], [0], [0], [1], [0, 0, 1, 1], [], []>} : vector<2x1024xf32>, vector<1024x32xf32>, vector<2x32xf32> -> vector<2x32xf32>
    %13 = arith.addf %10, %12 : vector<2x32xf32>
    %c0_10 = arith.constant 0 : index
    %c0_11 = arith.constant 0 : index
    %14 = vector.load %arg6[%c0_10, %c0_11] : memref<2x32xf32, #tpu.memory_space<vmem>>, vector<2x32xf32>
    tpu.vector_store %arg6[%c0_10, %c0_11], %13 {strides = array<i32>} : memref<2x32xf32, #tpu.memory_space<vmem>>, vector<2x32xf32>,
    return
  }
  func.func @transform_0(%arg0: i32) -> (i32, i32) {
    %c0_i32 = arith.constant 0 : i32
    %c0_i32_0 = arith.constant 0 : i32
    return %c0_i32, %arg0 : i32, i32
  }
  func.func @transform_1(%arg0: i32) -> (i32, i32) {
    %c0_i32 = arith.constant 0 : i32
    %c0_i32_0 = arith.constant 0 : i32
    return %c0_i32, %arg0 : i32, i32
  }
  func.func @transform_2(%arg0: i32) -> (i32, i32) {
    %c0_i32 = arith.constant 0 : i32
    %c0_i32_0 = arith.constant 0 : i32
    return %c0_i32, %arg0 : i32, i32
  }
  func.func @transform_3(%arg0: i32) -> (i32, i32) {
    %c0_i32 = arith.constant 0 : i32
    %c0_i32_0 = arith.constant 0 : i32
    return %arg0, %c0_i32 : i32, i32
  }
  func.func @transform_4(%arg0: i32) -> (i32, i32) {
    %c0_i32 = arith.constant 0 : i32
    %c0_i32_0 = arith.constant 0 : i32
    %c0_i32_1 = arith.constant 0 : i32
    return %c0_i32, %c0_i32_0 : i32, i32
  }
  func.func @transform_5(%arg0: i32) -> (i32, i32) {
    %c0_i32 = arith.constant 0 : i32
    %c0_i32_0 = arith.constant 0 : i32
    %c0_i32_1 = arith.constant 0 : i32
    return %c0_i32, %c0_i32_0 : i32, i32
  }
}

</mosaic_0001>

<llo_original>
// kernel: tpu_custom_call.1
$region0: #{tpu_custom_call.1}
  #allocation0 [shape = 'u32[]', space=smem, size = 0x4, offset = 0x4, fixed_abs, tag = 'smem constant byte address 0x4 - core index']
  #allocation1 [shape = 'u32[144,128]{1,0:T(1,128)}', space=vmem, size = 0x12000, scoped, tag = 'internal scratch']
  %s0 = inlined_call_operand.vmem [shape: f32[2,1024], index: 0, kind: input, shape index: {}]
  %s1 = inlined_call_operand.vmem [shape: f32[1,1024], index: 1, kind: input, shape index: {}]
  %s2 = inlined_call_operand.vmem [shape: f32[1,1024], index: 2, kind: input, shape index: {}]
  %s3 = inlined_call_operand.vmem [shape: f32[1024,32], index: 3, kind: input, shape index: {}]
  %s4 = inlined_call_operand.vmem [shape: f32[1,32], index: 4, kind: input, shape index: {}]
  %s5 = inlined_call_operand.hbm [shape: f32[2,32], index: 5, kind: output, shape index: {}]
  %s6 = sld [smem:[#allocation0]]
  $region34: #{tpu_custom_call.1} parent=0
    _
  %s8 = ssub.s32 1, %s6
  %s9 = scalar_select 0, %s8, %s6
  $region1: #{tpu_custom_call.1} parent=0
    #allocation2 [shape = 'u8[1024]{0}', space=vmem, size = 0x400, scoped, tag = 'output window, operand 0, single buffered']
    #allocation3 [shape = 's32[1]{0}', space=sflag, size = 0x4, scoped, tag = 'scoped memory for tpu_custom_call.1']
    %10 = vsyncpa [#allocation3], 0
    // Predicated region
    $region2: #{tpu_custom_call.1} parent=1 // pred_check
      _
    $region3: #{tpu_custom_call.1} parent=1 // pred_check_branch
      %12 = sbr.rel (0) target = $region5
    $region4: #{tpu_custom_call.1} parent=1 // pred_region
      _
    $region5: #{tpu_custom_call.1} parent=1 // pred_fallthru
      _
    // Predicated region
    $region6: #{tpu_custom_call.1} parent=1 // pred_check
      _
    $region7: #{tpu_custom_call.1} parent=1 // pred_check_branch
      %14 = sbr.rel (0) target = $region9
    $region8: #{tpu_custom_call.1} parent=1 // pred_region
      _
    $region9: #{tpu_custom_call.1} parent=1 // pred_fallthru
      _
    // Predicated region
    $region10: #{tpu_custom_call.1} parent=1 // pred_check
      _
    $region11: #{tpu_custom_call.1} parent=1 // pred_check_branch
      %16 = sbr.rel (0) target = $region13
    $region12: #{tpu_custom_call.1} parent=1 // pred_region
      _
    $region13: #{tpu_custom_call.1} parent=1 // pred_fallthru
      _
    // Predicated region
    $region14: #{tpu_custom_call.1} parent=1 // pred_check
      _
    $region15: #{tpu_custom_call.1} parent=1 // pred_check_branch
      %18 = sbr.rel (0) target = $region17
    $region16: #{tpu_custom_call.1} parent=1 // pred_region
      _
    $region17: #{tpu_custom_call.1} parent=1 // pred_fallthru
      _
    // Predicated region
    $region18: #{tpu_custom_call.1} parent=1 // pred_check
      _
    $region19: #{tpu_custom_call.1} parent=1 // pred_check_branch
      %20 = sbr.rel (0) target = $region21
    $region20: #{tpu_custom_call.1} parent=1 // pred_region
      _
    $region21: #{tpu_custom_call.1} parent=1 // pred_fallthru
      _
    %v21 = vld [vmem:[%s0] sm:$0xff]
    %v22 = vld [vmem:[%s0 + $0x8] sm:$0xff]
    %v23 = vld [vmem:[%s1] sm:$0xff]
    %v25 = vlaneseq
    %v26 = vshrl.u32 %v25, 7
    %v27 = vsub.s32 0, %v26
    %v28 = vrot.slane %v23, %v27
    %v29 = vlaneseq
    %v30 = vshrl.u32 %v29, 7
    %v31 = vsub.s32 1, %v30
    %v32 = vrot.slane %v23, %v31
    %v33 = vlaneseq
    %v34 = vshrl.u32 %v33, 7
    %v35 = vsub.s32 2, %v34
    %v36 = vrot.slane %v23, %v35
    %v37 = vlaneseq
    %v38 = vshrl.u32 %v37, 7
    %v39 = vsub.s32 3, %v38
    %v40 = vrot.slane %v23, %v39
    %v41 = vlaneseq
    %v42 = vshrl.u32 %v41, 7
    %v43 = vsub.s32 4, %v42
    %v44 = vrot.slane %v23, %v43
    %v45 = vlaneseq
    %v46 = vshrl.u32 %v45, 7
    %v47 = vsub.s32 5, %v46
    %v48 = vrot.slane %v23, %v47
    %v49 = vlaneseq
    %v50 = vshrl.u32 %v49, 7
    %v51 = vsub.s32 6, %v50
    %v52 = vrot.slane %v23, %v51
    %v53 = vlaneseq
    %v54 = vshrl.u32 %v53, 7
    %v55 = vsub.s32 7, %v54
    %v56 = vrot.slane %v23, %v55
    %v57 = vcombine.low %v28, %v32
    %v58 = vcombine.low %v36, %v40
    %v60 = vunpack.c.l.s4 1983009808
    %v61 = vunpack.c.0.s8 %v60
    %v62 = vlaneseq
    %v63 = vshrl.u32 %v62, 7
    %v64 = vsub.s32 %v61, %v63
    %v65 = vrot.slane %v57, %v64
    %v67 = vunpack.c.l.s4 1983009808
    %v68 = vunpack.c.0.s8 %v67
    %v69 = vlaneseq
    %v70 = vshrl.u32 %v69, 7
    %v71 = vsub.s32 %v68, %v70
    %v72 = vrot.slane %v58, %v71
    %v73 = vcombine.low %v65, %v72
    %v74 = vcombine.low %v44, %v48
    %v75 = vcombine.low %v52, %v56
    %v77 = vunpack.c.l.s4 1983009808
    %v78 = vunpack.c.0.s8 %v77
    %v79 = vlaneseq
    %v80 = vshrl.u32 %v79, 7
    %v81 = vsub.s32 %v78, %v80
    %v82 = vrot.slane %v74, %v81
    %v84 = vunpack.c.l.s4 1983009808
    %v85 = vunpack.c.0.s8 %v84
    %v86 = vlaneseq
    %v87 = vshrl.u32 %v86, 7
    %v88 = vsub.s32 %v85, %v87
    %v89 = vrot.slane %v75, %v88
    %v90 = vcombine.low %v82, %v89
    %v93 = vmul.f32 %v21, %v73
    %v94 = vmul.f32 %v22, %v90
    %v95 = vld [vmem:[%s2] sm:$0xff]
    %v97 = vlaneseq
    %v98 = vshrl.u32 %v97, 7
    %v99 = vsub.s32 0, %v98
    %v100 = vrot.slane %v95, %v99
    %v101 = vlaneseq
    %v102 = vshrl.u32 %v101, 7
    %v103 = vsub.s32 1, %v102
    %v104 = vrot.slane %v95, %v103
    %v105 = vlaneseq
    %v106 = vshrl.u32 %v105, 7
    %v107 = vsub.s32 2, %v106
    %v108 = vrot.slane %v95, %v107
    %v109 = vlaneseq
    %v110 = vshrl.u32 %v109, 7
    %v111 = vsub.s32 3, %v110
    %v112 = vrot.slane %v95, %v111
    %v113 = vlaneseq
    %v114 = vshrl.u32 %v113, 7
    %v115 = vsub.s32 4, %v114
    %v116 = vrot.slane %v95, %v115
    %v117 = vlaneseq
    %v118 = vshrl.u32 %v117, 7
    %v119 = vsub.s32 5, %v118
    %v120 = vrot.slane %v95, %v119
    %v121 = vlaneseq
    %v122 = vshrl.u32 %v121, 7
    %v123 = vsub.s32 6, %v122
    %v124 = vrot.slane %v95, %v123
    %v125 = vlaneseq
    %v126 = vshrl.u32 %v125, 7
    %v127 = vsub.s32 7, %v126
    %v128 = vrot.slane %v95, %v127
    %v129 = vcombine.low %v100, %v104
    %v130 = vcombine.low %v108, %v112
    %v132 = vunpack.c.l.s4 1983009808
    %v133 = vunpack.c.0.s8 %v132
    %v134 = vlaneseq
    %v135 = vshrl.u32 %v134, 7
    %v136 = vsub.s32 %v133, %v135
    %v137 = vrot.slane %v129, %v136
    %v139 = vunpack.c.l.s4 1983009808
    %v140 = vunpack.c.0.s8 %v139
    %v141 = vlaneseq
    %v142 = vshrl.u32 %v141, 7
    %v143 = vsub.s32 %v140, %v142
    %v144 = vrot.slane %v130, %v143
    %v145 = vcombine.low %v137, %v144
    %v146 = vcombine.low %v116, %v120
    %v147 = vcombine.low %v124, %v128
    %v149 = vunpack.c.l.s4 1983009808
    %v150 = vunpack.c.0.s8 %v149
    %v151 = vlaneseq
    %v152 = vshrl.u32 %v151, 7
    %v153 = vsub.s32 %v150, %v152
    %v154 = vrot.slane %v146, %v153
    %v156 = vunpack.c.l.s4 1983009808
    %v157 = vunpack.c.0.s8 %v156
    %v158 = vlaneseq
    %v159 = vshrl.u32 %v158, 7
    %v160 = vsub.s32 %v157, %v159
    %v161 = vrot.slane %v147, %v160
    %v162 = vcombine.low %v154, %v161
    %v165 = vadd.f32 %v93, %v145
    %v166 = vadd.f32 %v94, %v162
    %p167 = scmp.eq.s32.totalorder 0, 0
    // Predicated region
    $region22: #{tpu_custom_call.1} parent=1 // pred_check
      %p168 = pneg %p167
    $region23: #{tpu_custom_call.1} parent=1 // pred_check_branch
      %170 = sbr.rel (%p168) target = $region25
    $region24: #{tpu_custom_call.1} parent=1 // pred_region
      %v171 = vld [vmem:[%s4] sm:$0x1]
      %v173 = vlaneseq
      %v174 = vshrl.u32 %v173, 7
      %v175 = vsub.s32 0, %v174
      %v176 = vrot.slane %v171, %v175
      %vm178 = vcmask 254976
      %179 = vst.msk [vmem:[#allocation2] sm:$0x3] %vm178, %v176
    $region25: #{tpu_custom_call.1} parent=1 // pred_fallthru
      _
    %v180 = vld [vmem:[#allocation2] sm:$0x3]
    %v181 = vld [vmem:[%s3] sm:$0xff]
    %v182 = vld [vmem:[%s3 + $0x8] sm:$0xff]
    %v183 = vld [vmem:[%s3 + $0x10] sm:$0xff]
    %v184 = vld [vmem:[%s3 + $0x18] sm:$0xff]
    %v185 = vld [vmem:[%s3 + $0x20] sm:$0xff]
    %v186 = vld [vmem:[%s3 + $0x28] sm:$0xff]
    %v187 = vld [vmem:[%s3 + $0x30] sm:$0xff]
    %v188 = vld [vmem:[%s3 + $0x38] sm:$0xff]
    %v189 = vld [vmem:[%s3 + $0x40] sm:$0xff]
    %v190 = vld [vmem:[%s3 + $0x48] sm:$0xff]
    %v191 = vld [vmem:[%s3 + $0x50] sm:$0xff]
    %v192 = vld [vmem:[%s3 + $0x58] sm:$0xff]
    %v193 = vld [vmem:[%s3 + $0x60] sm:$0xff]
    %v194 = vld [vmem:[%s3 + $0x68] sm:$0xff]
    %v195 = vld [vmem:[%s3 + $0x70] sm:$0xff]
    %v196 = vld [vmem:[%s3 + $0x78] sm:$0xff]
    %v197 = vld [vmem:[%s3 + $0x80] sm:$0xff]
    %v198 = vld [vmem:[%s3 + $0x88] sm:$0xff]
    %v199 = vld [vmem:[%s3 + $0x90] sm:$0xff]
    %v200 = vld [vmem:[%s3 + $0x98] sm:$0xff]
    %v201 = vld [vmem:[%s3 + $0xa0] sm:$0xff]
    %v202 = vld [vmem:[%s3 + $0xa8] sm:$0xff]
    %v203 = vld [vmem:[%s3 + $0xb0] sm:$0xff]
    %v204 = vld [vmem:[%s3 + $0xb8] sm:$0xff]
    %v205 = vld [vmem:[%s3 + $0xc0] sm:$0xff]
    %v206 = vld [vmem:[%s3 + $0xc8] sm:$0xff]
    %v207 = vld [vmem:[%s3 + $0xd0] sm:$0xff]
    %v208 = vld [vmem:[%s3 + $0xd8] sm:$0xff]
    %v209 = vld [vmem:[%s3 + $0xe0] sm:$0xff]
    %v210 = vld [vmem:[%s3 + $0xe8] sm:$0xff]
    %v211 = vld [vmem:[%s3 + $0xf0] sm:$0xff]
    %v212 = vld [vmem:[%s3 + $0xf8] sm:$0xff]
    %v213 = vld [vmem:[%s3 + $0x100] sm:$0xff]
    %v214 = vld [vmem:[%s3 + $0x108] sm:$0xff]
    %v215 = vld [vmem:[%s3 + $0x110] sm:$0xff]
    %v216 = vld [vmem:[%s3 + $0x118] sm:$0xff]
    %v217 = vld [vmem:[%s3 + $0x120] sm:$0xff]
    %v218 = vld [vmem:[%s3 + $0x128] sm:$0xff]
    %v219 = vld [vmem:[%s3 + $0x130] sm:$0xff]
    %v220 = vld [vmem:[%s3 + $0x138] sm:$0xff]
    %v221 = vld [vmem:[%s3 + $0x140] sm:$0xff]
    %v222 = vld [vmem:[%s3 + $0x148] sm:$0xff]
    %v223 = vld [vmem:[%s3 + $0x150] sm:$0xff]
    %v224 = vld [vmem:[%s3 + $0x158] sm:$0xff]
    %v225 = vld [vmem:[%s3 + $0x160] sm:$0xff]
    %v226 = vld [vmem:[%s3 + $0x168] sm:$0xff]
    %v227 = vld [vmem:[%s3 + $0x170] sm:$0xff]
    %v228 = vld [vmem:[%s3 + $0x178] sm:$0xff]
    %v229 = vld [vmem:[%s3 + $0x180] sm:$0xff]
    %v230 = vld [vmem:[%s3 + $0x188] sm:$0xff]
    %v231 = vld [vmem:[%s3 + $0x190] sm:$0xff]
    %v232 = vld [vmem:[%s3 + $0x198] sm:$0xff]
    %v233 = vld [vmem:[%s3 + $0x1a0] sm:$0xff]
    %v234 = vld [vmem:[%s3 + $0x1a8] sm:$0xff]
    %v235 = vld [vmem:[%s3 + $0x1b0] sm:$0xff]
    %v236 = vld [vmem:[%s3 + $0x1b8] sm:$0xff]
    %v237 = vld [vmem:[%s3 + $0x1c0] sm:$0xff]
    %v238 = vld [vmem:[%s3 + $0x1c8] sm:$0xff]
    %v239 = vld [vmem:[%s3 + $0x1d0] sm:$0xff]
    %v240 = vld [vmem:[%s3 + $0x1d8] sm:$0xff]
    %v241 = vld [vmem:[%s3 + $0x1e0] sm:$0xff]
    %v242 = vld [vmem:[%s3 + $0x1e8] sm:$0xff]
    %v243 = vld [vmem:[%s3 + $0x1f0] sm:$0xff]
    %v244 = vld [vmem:[%s3 + $0x1f8] sm:$0xff]
    %v245 = vld [vmem:[%s3 + $0x200] sm:$0xff]
    %v246 = vld [vmem:[%s3 + $0x208] sm:$0xff]
    %v247 = vld [vmem:[%s3 + $0x210] sm:$0xff]
    %v248 = vld [vmem:[%s3 + $0x218] sm:$0xff]
    %v249 = vld [vmem:[%s3 + $0x220] sm:$0xff]
    %v250 = vld [vmem:[%s3 + $0x228] sm:$0xff]
    %v251 = vld [vmem:[%s3 + $0x230] sm:$0xff]
    %v252 = vld [vmem:[%s3 + $0x238] sm:$0xff]
    %v253 = vld [vmem:[%s3 + $0x240] sm:$0xff]
    %v254 = vld [vmem:[%s3 + $0x248] sm:$0xff]
    %v255 = vld [vmem:[%s3 + $0x250] sm:$0xff]
    %v256 = vld [vmem:[%s3 + $0x258] sm:$0xff]
    %v257 = vld [vmem:[%s3 + $0x260] sm:$0xff]
    %v258 = vld [vmem:[%s3 + $0x268] sm:$0xff]
    %v259 = vld [vmem:[%s3 + $0x270] sm:$0xff]
    %v260 = vld [vmem:[%s3 + $0x278] sm:$0xff]
    %v261 = vld [vmem:[%s3 + $0x280] sm:$0xff]
    %v262 = vld [vmem:[%s3 + $0x288] sm:$0xff]
    %v263 = vld [vmem:[%s3 + $0x290] sm:$0xff]
    %v264 = vld [vmem:[%s3 + $0x298] sm:$0xff]
    %v265 = vld [vmem:[%s3 + $0x2a0] sm:$0xff]
    %v266 = vld [vmem:[%s3 + $0x2a8] sm:$0xff]
    %v267 = vld [vmem:[%s3 + $0x2b0] sm:$0xff]
    %v268 = vld [vmem:[%s3 + $0x2b8] sm:$0xff]
    %v269 = vld [vmem:[%s3 + $0x2c0] sm:$0xff]
    %v270 = vld [vmem:[%s3 + $0x2c8] sm:$0xff]
    %v271 = vld [vmem:[%s3 + $0x2d0] sm:$0xff]
    %v272 = vld [vmem:[%s3 + $0x2d8] sm:$0xff]
    %v273 = vld [vmem:[%s3 + $0x2e0] sm:$0xff]
    %v274 = vld [vmem:[%s3 + $0x2e8] sm:$0xff]
    %v275 = vld [vmem:[%s3 + $0x2f0] sm:$0xff]
    %v276 = vld [vmem:[%s3 + $0x2f8] sm:$0xff]
    %v277 = vld [vmem:[%s3 + $0x300] sm:$0xff]
    %v278 = vld [vmem:[%s3 + $0x308] sm:$0xff]
    %v279 = vld [vmem:[%s3 + $0x310] sm:$0xff]
    %v280 = vld [vmem:[%s3 + $0x318] sm:$0xff]
    %v281 = vld [vmem:[%s3 + $0x320] sm:$0xff]
    %v282 = vld [vmem:[%s3 + $0x328] sm:$0xff]
    %v283 = vld [vmem:[%s3 + $0x330] sm:$0xff]
    %v284 = vld [vmem:[%s3 + $0x338] sm:$0xff]
    %v285 = vld [vmem:[%s3 + $0x340] sm:$0xff]
    %v286 = vld [vmem:[%s3 + $0x348] sm:$0xff]
    %v287 = vld [vmem:[%s3 + $0x350] sm:$0xff]
    %v288 = vld [vmem:[%s3 + $0x358] sm:$0xff]
    %v289 = vld [vmem:[%s3 + $0x360] sm:$0xff]
    %v290 = vld [vmem:[%s3 + $0x368] sm:$0xff]
    %v291 = vld [vmem:[%s3 + $0x370] sm:$0xff]
    %v292 = vld [vmem:[%s3 + $0x378] sm:$0xff]
    %v293 = vld [vmem:[%s3 + $0x380] sm:$0xff]
    %v294 = vld [vmem:[%s3 + $0x388] sm:$0xff]
    %v295 = vld [vmem:[%s3 + $0x390] sm:$0xff]
    %v296 = vld [vmem:[%s3 + $0x398] sm:$0xff]
    %v297 = vld [vmem:[%s3 + $0x3a0] sm:$0xff]
    %v298 = vld [vmem:[%s3 + $0x3a8] sm:$0xff]
    %v299 = vld [vmem:[%s3 + $0x3b0] sm:$0xff]
    %v300 = vld [vmem:[%s3 + $0x3b8] sm:$0xff]
    %v301 = vld [vmem:[%s3 + $0x3c0] sm:$0xff]
    %v302 = vld [vmem:[%s3 + $0x3c8] sm:$0xff]
    %v303 = vld [vmem:[%s3 + $0x3d0] sm:$0xff]
    %v304 = vld [vmem:[%s3 + $0x3d8] sm:$0xff]
    %v305 = vld [vmem:[%s3 + $0x3e0] sm:$0xff]
    %v306 = vld [vmem:[%s3 + $0x3e8] sm:$0xff]
    %v307 = vld [vmem:[%s3 + $0x3f0] sm:$0xff]
    %v308 = vld [vmem:[%s3 + $0x3f8] sm:$0xff]
    %v311 = vcombine.high %v165, %v165
    %v313 = vunpack.c.l.s4 1983009808
    %v314 = vunpack.c.0.s8 %v313
    %v315 = vlaneseq
    %v316 = vshrl.u32 %v315, 7
    %v317 = vsub.s32 %v314, %v316
    %v318 = vrot.slane %v165, %v317
    %v320 = vunpack.c.l.s4 1983009808
    %v321 = vunpack.c.0.s8 %v320
    %v322 = vlaneseq
    %v323 = vshrl.u32 %v322, 7
    %v324 = vsub.s32 %v321, %v323
    %v325 = vrot.slane %v311, %v324
    %v326 = vcombine.high %v318, %v318
    %v327 = vcombine.high %v325, %v325
    %v328 = vcombine.high %v166, %v166
    %v330 = vunpack.c.l.s4 1983009808
    %v331 = vunpack.c.0.s8 %v330
    %v332 = vlaneseq
    %v333 = vshrl.u32 %v332, 7
    %v334 = vsub.s32 %v331, %v333
    %v335 = vrot.slane %v166, %v334
    %v337 = vunpack.c.l.s4 1983009808
    %v338 = vunpack.c.0.s8 %v337
    %v339 = vlaneseq
    %v340 = vshrl.u32 %v339, 7
    %v341 = vsub.s32 %v338, %v340
    %v342 = vrot.slane %v328, %v341
    %v343 = vcombine.high %v335, %v335
    %v344 = vcombine.high %v342, %v342
    %353 = vmatprep.subr.mxu0 0.0
    %354 = vmatpush1.msra.mxu0 %v181
    %355 = vmatprep.subr.mxu0 0.0
    %356 = vmatpush1.msra.mxu0 %v182
    %357 = vmatprep.subr.mxu0 0.0
    %358 = vmatpush1.msra.mxu0 %v183
    %359 = vmatprep.subr.mxu0 0.0
    %360 = vmatpush1.msra.mxu0 %v184
    %361 = vmatprep.subr.mxu0 0.0
    %362 = vmatpush1.msra.mxu0 %v185
    %363 = vmatprep.subr.mxu0 0.0
    %364 = vmatpush1.msra.mxu0 %v186
    %365 = vmatprep.subr.mxu0 0.0
    %366 = vmatpush1.msra.mxu0 %v187
    %367 = vmatprep.subr.mxu0 0.0
    %368 = vmatpush1.msra.mxu0 %v188
    %369 = vmatprep.subr.mxu0 0.0
    %370 = vmatpush1.msra.mxu0 %v189
    %371 = vmatprep.subr.mxu0 0.0
    %372 = vmatpush1.msra.mxu0 %v190
    %373 = vmatprep.subr.mxu0 0.0
    %374 = vmatpush1.msra.mxu0 %v191
    %375 = vmatprep.subr.mxu0 0.0
    %376 = vmatpush1.msra.mxu0 %v192
    %377 = vmatprep.subr.mxu0 0.0
    %378 = vmatpush1.msra.mxu0 %v193
    %379 = vmatprep.subr.mxu0 0.0
    %380 = vmatpush1.msra.mxu0 %v194
    %381 = vmatprep.subr.mxu0 0.0
    %382 = vmatpush1.msra.mxu0 %v195
    %383 = vmatprep.subr.mxu0 0.0
    %384 = vmatpush1.msra.mxu0 %v196
    %385 = vmatprep.subr.mxu0 0.0
    %386 = vmatpush1.msra.mxu0 %v197
    %387 = vmatprep.subr.mxu0 0.0
    %388 = vmatpush1.msra.mxu0 %v198
    %389 = vmatprep.subr.mxu0 0.0
    %390 = vmatpush1.msra.mxu0 %v199
    %391 = vmatprep.subr.mxu0 0.0
    %392 = vmatpush1.msra.mxu0 %v200
    %393 = vmatprep.subr.mxu0 0.0
    %394 = vmatpush1.msra.mxu0 %v201
    %395 = vmatprep.subr.mxu0 0.0
    %396 = vmatpush1.msra.mxu0 %v202
    %397 = vmatprep.subr.mxu0 0.0
    %398 = vmatpush1.msra.mxu0 %v203
    %399 = vmatprep.subr.mxu0 0.0
    %400 = vmatpush1.msra.mxu0 %v204
    %401 = vmatprep.subr.mxu0 0.0
    %402 = vmatpush1.msra.mxu0 %v205
    %403 = vmatprep.subr.mxu0 0.0
    %404 = vmatpush1.msra.mxu0 %v206
    %405 = vmatprep.subr.mxu0 0.0
    %406 = vmatpush1.msra.mxu0 %v207
    %407 = vmatprep.subr.mxu0 0.0
    %408 = vmatpush1.msra.mxu0 %v208
    %409 = vmatprep.subr.mxu0 0.0
    %410 = vmatpush1.msra.mxu0 %v209
    %411 = vmatprep.subr.mxu0 0.0
    %412 = vmatpush1.msra.mxu0 %v210
    %413 = vmatprep.subr.mxu0 0.0
    %414 = vmatpush1.msra.mxu0 %v211
    %415 = vmatprep.subr.mxu0 0.0
    %416 = vmatpush1.msra.mxu0 %v212
    %417 = vmatprep.mubr.f32.mxu0 %v326
    %418 = vmatmul.mubr.f32.gmra.mrb[0].mxu0 %v318
    %v419 = vpop.f32.mrb[0].mxu0
    %v420 = vadd.f32 0.0, %v419
    %v421 = vpop.f32.mrb[0].mxu0
    %422 = vdwg.mxu0
    %423 = vmatprep.subr.mxu0 0.0
    %424 = vmatpush1.msra.mxu0 %v213
    %425 = vmatprep.subr.mxu0 0.0
    %426 = vmatpush1.msra.mxu0 %v214
    %427 = vmatprep.subr.mxu0 0.0
    %428 = vmatpush1.msra.mxu0 %v215
    %429 = vmatprep.subr.mxu0 0.0
    %430 = vmatpush1.msra.mxu0 %v216
    %431 = vmatprep.subr.mxu0 0.0
    %432 = vmatpush1.msra.mxu0 %v217
    %433 = vmatprep.subr.mxu0 0.0
    %434 = vmatpush1.msra.mxu0 %v218
    %435 = vmatprep.subr.mxu0 0.0
    %436 = vmatpush1.msra.mxu0 %v219
    %437 = vmatprep.subr.mxu0 0.0
    %438 = vmatpush1.msra.mxu0 %v220
    %439 = vmatprep.subr.mxu0 0.0
    %440 = vmatpush1.msra.mxu0 %v221
    %441 = vmatprep.subr.mxu0 0.0
    %442 = vmatpush1.msra.mxu0 %v222
    %443 = vmatprep.subr.mxu0 0.0
    %444 = vmatpush1.msra.mxu0 %v223
    %445 = vmatprep.subr.mxu0 0.0
    %446 = vmatpush1.msra.mxu0 %v224
    %447 = vmatprep.subr.mxu0 0.0
    %448 = vmatpush1.msra.mxu0 %v225
    %449 = vmatprep.subr.mxu0 0.0
    %450 = vmatpush1.msra.mxu0 %v226
    %451 = vmatprep.subr.mxu0 0.0
    %452 = vmatpush1.msra.mxu0 %v227
    %453 = vmatprep.subr.mxu0 0.0
    %454 = vmatpush1.msra.mxu0 %v228
    %455 = vmatprep.subr.mxu0 0.0
    %456 = vmatpush1.msra.mxu0 %v229
    %457 = vmatprep.subr.mxu0 0.0
    %458 = vmatpush1.msra.mxu0 %v230
    %459 = vmatprep.subr.mxu0 0.0
    %460 = vmatpush1.msra.mxu0 %v231
    %461 = vmatprep.subr.mxu0 0.0
    %462 = vmatpush1.msra.mxu0 %v232
    %463 = vmatprep.subr.mxu0 0.0
    %464 = vmatpush1.msra.mxu0 %v233
    %465 = vmatprep.subr.mxu0 0.0
    %466 = vmatpush1.msra.mxu0 %v234
    %467 = vmatprep.subr.mxu0 0.0
    %468 = vmatpush1.msra.mxu0 %v235
    %469 = vmatprep.subr.mxu0 0.0
    %470 = vmatpush1.msra.mxu0 %v236
    %471 = vmatprep.subr.mxu0 0.0
    %472 = vmatpush1.msra.mxu0 %v237
    %473 = vmatprep.subr.mxu0 0.0
    %474 = vmatpush1.msra.mxu0 %v238
    %475 = vmatprep.subr.mxu0 0.0
    %476 = vmatpush1.msra.mxu0 %v239
    %477 = vmatprep.subr.mxu0 0.0
    %478 = vmatpush1.msra.mxu0 %v240
    %479 = vmatprep.subr.mxu0 0.0
    %480 = vmatpush1.msra.mxu0 %v241
    %481 = vmatprep.subr.mxu0 0.0
    %482 = vmatpush1.msra.mxu0 %v242
    %483 = vmatprep.subr.mxu0 0.0
    %484 = vmatpush1.msra.mxu0 %v243
    %485 = vmatprep.subr.mxu0 0.0
    %486 = vmatpush1.msra.mxu0 %v244
    %487 = vmatprep.mubr.f32.mxu0 %v327
    %488 = vmatmul.mubr.f32.gmra.mrb[0].mxu0 %v325
    %v489 = vpop.f32.mrb[0].mxu0
    %v490 = vadd.f32 %v420, %v489
    %v491 = vpop.f32.mrb[0].mxu0
    %492 = vdwg.mxu0
    %493 = vmatprep.subr.mxu0 0.0
    %494 = vmatpush1.msra.mxu0 %v245
    %495 = vmatprep.subr.mxu0 0.0
    %496 = vmatpush1.msra.mxu0 %v246
    %497 = vmatprep.subr.mxu0 0.0
    %498 = vmatpush1.msra.mxu0 %v247
    %499 = vmatprep.subr.mxu0 0.0
    %500 = vmatpush1.msra.mxu0 %v248
    %501 = vmatprep.subr.mxu0 0.0
    %502 = vmatpush1.msra.mxu0 %v249
    %503 = vmatprep.subr.mxu0 0.0
    %504 = vmatpush1.msra.mxu0 %v250
    %505 = vmatprep.subr.mxu0 0.0
    %506 = vmatpush1.msra.mxu0 %v251
    %507 = vmatprep.subr.mxu0 0.0
    %508 = vmatpush1.msra.mxu0 %v252
    %509 = vmatprep.subr.mxu0 0.0
    %510 = vmatpush1.msra.mxu0 %v253
    %511 = vmatprep.subr.mxu0 0.0
    %512 = vmatpush1.msra.mxu0 %v254
    %513 = vmatprep.subr.mxu0 0.0
    %514 = vmatpush1.msra.mxu0 %v255
    %515 = vmatprep.subr.mxu0 0.0
    %516 = vmatpush1.msra.mxu0 %v256
    %517 = vmatprep.subr.mxu0 0.0
    %518 = vmatpush1.msra.mxu0 %v257
    %519 = vmatprep.subr.mxu0 0.0
    %520 = vmatpush1.msra.mxu0 %v258
    %521 = vmatprep.subr.mxu0 0.0
    %522 = vmatpush1.msra.mxu0 %v259
    %523 = vmatprep.subr.mxu0 0.0
    %524 = vmatpush1.msra.mxu0 %v260
    %525 = vmatprep.subr.mxu0 0.0
    %526 = vmatpush1.msra.mxu0 %v261
    %527 = vmatprep.subr.mxu0 0.0
    %528 = vmatpush1.msra.mxu0 %v262
    %529 = vmatprep.subr.mxu0 0.0
    %530 = vmatpush1.msra.mxu0 %v263
    %531 = vmatprep.subr.mxu0 0.0
    %532 = vmatpush1.msra.mxu0 %v264
    %533 = vmatprep.subr.mxu0 0.0
    %534 = vmatpush1.msra.mxu0 %v265
    %535 = vmatprep.subr.mxu0 0.0
    %536 = vmatpush1.msra.mxu0 %v266
    %537 = vmatprep.subr.mxu0 0.0
    %538 = vmatpush1.msra.mxu0 %v267
    %539 = vmatprep.subr.mxu0 0.0
    %540 = vmatpush1.msra.mxu0 %v268
    %541 = vmatprep.subr.mxu0 0.0
    %542 = vmatpush1.msra.mxu0 %v269
    %543 = vmatprep.subr.mxu0 0.0
    %544 = vmatpush1.msra.mxu0 %v270
    %545 = vmatprep.subr.mxu0 0.0
    %546 = vmatpush1.msra.mxu0 %v271
    %547 = vmatprep.subr.mxu0 0.0
    %548 = vmatpush1.msra.mxu0 %v272
    %549 = vmatprep.subr.mxu0 0.0
    %550 = vmatpush1.msra.mxu0 %v273
    %551 = vmatprep.subr.mxu0 0.0
    %552 = vmatpush1.msra.mxu0 %v274
    %553 = vmatprep.subr.mxu0 0.0
    %554 = vmatpush1.msra.mxu0 %v275
    %555 = vmatprep.subr.mxu0 0.0
    %556 = vmatpush1.msra.mxu0 %v276
    %557 = vmatprep.mubr.f32.mxu0 %v343
    %558 = vmatmul.mubr.f32.gmra.mrb[0].mxu0 %v335
    %v559 = vpop.f32.mrb[0].mxu0
    %v560 = vadd.f32 %v490, %v559
    %v561 = vpop.f32.mrb[0].mxu0
    %562 = vdwg.mxu0
    %563 = vmatprep.subr.mxu0 0.0
    %564 = vmatpush1.msra.mxu0 %v277
    %565 = vmatprep.subr.mxu0 0.0
    %566 = vmatpush1.msra.mxu0 %v278
    %567 = vmatprep.subr.mxu0 0.0
    %568 = vmatpush1.msra.mxu0 %v279
    %569 = vmatprep.subr.mxu0 0.0
    %570 = vmatpush1.msra.mxu0 %v280
    %571 = vmatprep.subr.mxu0 0.0
    %572 = vmatpush1.msra.mxu0 %v281
    %573 = vmatprep.subr.mxu0 0.0
    %574 = vmatpush1.msra.mxu0 %v282
    %575 = vmatprep.subr.mxu0 0.0
    %576 = vmatpush1.msra.mxu0 %v283
    %577 = vmatprep.subr.mxu0 0.0
    %578 = vmatpush1.msra.mxu0 %v284
    %579 = vmatprep.subr.mxu0 0.0
    %580 = vmatpush1.msra.mxu0 %v285
    %581 = vmatprep.subr.mxu0 0.0
    %582 = vmatpush1.msra.mxu0 %v286
    %583 = vmatprep.subr.mxu0 0.0
    %584 = vmatpush1.msra.mxu0 %v287
    %585 = vmatprep.subr.mxu0 0.0
    %586 = vmatpush1.msra.mxu0 %v288
    %587 = vmatprep.subr.mxu0 0.0
    %588 = vmatpush1.msra.mxu0 %v289
    %589 = vmatprep.subr.mxu0 0.0
    %590 = vmatpush1.msra.mxu0 %v290
    %591 = vmatprep.subr.mxu0 0.0
    %592 = vmatpush1.msra.mxu0 %v291
    %593 = vmatprep.subr.mxu0 0.0
    %594 = vmatpush1.msra.mxu0 %v292
    %595 = vmatprep.subr.mxu0 0.0
    %596 = vmatpush1.msra.mxu0 %v293
    %597 = vmatprep.subr.mxu0 0.0
    %598 = vmatpush1.msra.mxu0 %v294
    %599 = vmatprep.subr.mxu0 0.0
    %600 = vmatpush1.msra.mxu0 %v295
    %601 = vmatprep.subr.mxu0 0.0
    %602 = vmatpush1.msra.mxu0 %v296
    %603 = vmatprep.subr.mxu0 0.0
    %604 = vmatpush1.msra.mxu0 %v297
    %605 = vmatprep.subr.mxu0 0.0
    %606 = vmatpush1.msra.mxu0 %v298
    %607 = vmatprep.subr.mxu0 0.0
    %608 = vmatpush1.msra.mxu0 %v299
    %609 = vmatprep.subr.mxu0 0.0
    %610 = vmatpush1.msra.mxu0 %v300
    %611 = vmatprep.subr.mxu0 0.0
    %612 = vmatpush1.msra.mxu0 %v301
    %613 = vmatprep.subr.mxu0 0.0
    %614 = vmatpush1.msra.mxu0 %v302
    %615 = vmatprep.subr.mxu0 0.0
    %616 = vmatpush1.msra.mxu0 %v303
    %617 = vmatprep.subr.mxu0 0.0
    %618 = vmatpush1.msra.mxu0 %v304
    %619 = vmatprep.subr.mxu0 0.0
    %620 = vmatpush1.msra.mxu0 %v305
    %621 = vmatprep.subr.mxu0 0.0
    %622 = vmatpush1.msra.mxu0 %v306
    %623 = vmatprep.subr.mxu0 0.0
    %624 = vmatpush1.msra.mxu0 %v307
    %625 = vmatprep.subr.mxu0 0.0
    %626 = vmatpush1.msra.mxu0 %v308
    %627 = vmatprep.mubr.f32.mxu0 %v344
    %628 = vmatmul.mubr.f32.gmra.mrb[0].mxu0 %v342
    %v629 = vpop.f32.mrb[0].mxu0
    %v630 = vadd.f32 %v560, %v629
    %v631 = vpop.f32.mrb[0].mxu0
    %632 = vdwg.mxu0
    %v633 = vadd.f32 %v180, %v630
    %vm634 = vcmask 254976
    %635 = vst.msk [vmem:[#allocation2] sm:$0x3] %vm634, %v633
    // Predicated region
    $region26: #{tpu_custom_call.1} parent=1 // pred_check
      _
    $region27: #{tpu_custom_call.1} parent=1 // pred_check_branch
      %637 = sbr.rel (0) target = $region29
    $region28: #{tpu_custom_call.1} parent=1 // pred_region
      %s639 = ssub.s32 32, 32
      %640 = vsyncadd [#allocation3], %s639
      %s642 = sshll.u32 [#allocation2], 4
      %s643 = int_to_ptr.vmem [resolvable:$true] %s642
      %645 = dma.vmem_to_hbm [thread:$0]  %s643, 32, %s5, [#allocation3]
    $region29: #{tpu_custom_call.1} parent=1 // pred_fallthru
      _
    // Predicated region
    $region30: #{tpu_custom_call.1} parent=1 // pred_check
      _
    $region31: #{tpu_custom_call.1} parent=1 // pred_check_branch
      %647 = sbr.rel (0) target = $region33
    $region32: #{tpu_custom_call.1} parent=1 // pred_region
      %648 = dma.done [#allocation3], 32
    $region33: #{tpu_custom_call.1} parent=1 // pred_fallthru
      _
    %649 = vsyncpa [#allocation3], 1

</llo_original>
